<compile_context>
chip_gen: v7x
topology: tpu7x:2x2x1
jax: 0.10.0
libtpu: 0.0.40
codegen_flags: <defaults>
</compile_context>

<pallas_src>
import functools

import jax
import jax.numpy as jnp
import numpy as np
from jax import lax
from jax.experimental import pallas as pl
from jax.experimental.pallas import tpu as pltpu


def _focal_loss_kernel(*refs, gamma, n_total, use_alpha):
    if use_alpha:
        logits_ref, targets_ref, alphat_ref, out_ref, acc_ref = refs
    else:
        logits_ref, targets_ref, out_ref, acc_ref = refs
        alphat_ref = None

    s_idx = pl.program_id(1)

    @pl.when(s_idx == 0)
    def _init():
        acc_ref[0] = jnp.float32(0.0)

    logits = logits_ref[...].astype(jnp.float32)              # (TN, C)
    t = targets_ref[...]                                       # (TN, 1) int32
    rows, c = logits.shape

    # bool one-hot mask of targets (used for tgt_logit and tgt_e)
    class_ids = lax.broadcasted_iota(jnp.int32, (rows, c), 1)
    mask = class_ids == t                                       # (TN, C) bool

    # numerically-stable log-softmax CE; exp table reused for pt
    m = jnp.max(logits, axis=-1, keepdims=True)                 # (TN, 1)
    e = jnp.exp(logits - m)                                      # (TN, C)
    s = jnp.sum(e, axis=-1, keepdims=True)                       # (TN, 1)
    tgt_e = jnp.sum(jnp.where(mask, e, 0.0), axis=-1, keepdims=True)
    tgt_logit = jnp.sum(jnp.where(mask, logits, 0.0), axis=-1, keepdims=True)

    ce = jnp.log(s) + m - tgt_logit                              # (TN, 1)
    pt = tgt_e / s                                               # == exp(-ce)

    # focal weighting: integer gamma -> pure VALU multiplies, else clamped pow
    w = 1.0 - pt
    g = float(gamma)
    if g.is_integer():
        fw = lax.integer_pow(w, int(g))
    else:
        fw = jnp.maximum(w, 0.0) ** g
    focal = fw * ce                                              # (TN, 1)

    if use_alpha:
        # alpha_t was gathered in the wrapper -> one multiply, no (TN,C) reduce
        focal = alphat_ref[...].astype(jnp.float32) * focal

    # global tile index (parallel axis p owns a contiguous range of tiles);
    # rows past the real batch (tail / padded / clamped tiles) are masked out.
    tile_idx = pl.program_id(0) * pl.num_programs(1) + s_idx
    row_ids = tile_idx * rows + lax.broadcasted_iota(jnp.int32, (rows, 1), 0)
    valid = row_ids < n_total
    acc_ref[0] = acc_ref[0] + jnp.sum(jnp.where(valid, focal, 0.0))

    # write this partial's lane-dense output block every step (resident block,
    # written back once per p); wrapper reads element [0, 0].
    out_ref[...] = jnp.full(out_ref.shape, acc_ref[0], dtype=jnp.float32)


def _tpu_vmem_capacity_bytes():
    try:
        cap = int(pltpu.get_tpu_info().vmem_capacity_bytes)
        if cap > 0:
            return cap
    except Exception:
        pass
    return 64 * 2**20  # conservative default (v7x-sized)


def _row_cost_bytes(c, itemsize, use_alpha):
    # VMEM bytes per row per pipeline buffer, including lane padding to 128:
    # logits tile + targets (TN,1) int32 + optional alpha_t (TN,1) f32.
    c_pad = ((c + 127) // 128) * 128
    return c_pad * itemsize + 512 * (2 if use_alpha else 1)


def _choose_tile_rows(n, c, itemsize, use_alpha, capacity, override=None):
    """Row tile sized to ~capacity/8 per logits buffer, sublane-aligned."""
    sub = max(8, 32 // itemsize)                 # f32: 8, bf16: 16, int8/fp8: 32
    n_pad = ((n + sub - 1) // sub) * sub
    if override is not None:
        tn = max(sub, (int(override) // sub) * sub)
        return min(tn, n_pad), sub
    row_cost = _row_cost_bytes(c, itemsize, use_alpha)
    per_buffer_budget = capacity // 8            # 16 MiB on 128 MiB chips, 8 MiB on v7x
    tn = max(sub, (per_buffer_budget // row_cost // sub) * sub)
    return min(tn, n_pad), sub


def _vmem_limit_bytes(tn, c, itemsize, use_alpha, capacity):
    total = 2 * _row_cost_bytes(c, itemsize, use_alpha) * tn + (8 << 20)
    cap = (capacity * 3) // 4                    # 96 MiB on v5e/v6e, 48 MiB on v7x
    return int(max(32 << 20, min(cap, total)))


def focal_loss_pallas(logits, targets, alpha=None, gamma=2.0, reduction="mean",
                      tile_rows=None):
    """logits (N, C) float (f32/bf16), targets (N,) int, alpha optional (C,)."""
    n, c = logits.shape
    use_alpha = alpha is not None
    itemsize = jnp.dtype(logits.dtype).itemsize
    capacity = _tpu_vmem_capacity_bytes()
    tn, sub = _choose_tile_rows(n, c, itemsize, use_alpha, capacity, override=tile_rows)

    if reduction == "mean":
        scale = 1.0 / float(n)
    elif reduction == "sum":
        scale = 1.0
    else:
        # TODO(synk): reduction='none' would need a per-row (N,) output spec.
        raise NotImplementedError("only 'mean' and 'sum' reductions are implemented")

    targets_col = targets.reshape(n, 1).astype(jnp.int32)
    args = [logits, targets_col]
    if use_alpha:
        alpha_vec = jnp.asarray(alpha, jnp.float32)
        alpha_t = alpha_vec[targets_col[:, 0]].reshape(n, 1)   # cheap XLA gather
        args.append(alpha_t)

    # pad rows to a sublane multiple so blocks never exceed the array
    n_rows = n
    if n % sub:
        extra = sub - (n % sub)
        args = [jnp.pad(a, ((0, extra), (0, 0))) for a in args]
        n_rows = n + extra

    num_tiles = int(pl.cdiv(n_rows, tn))
    num_partials = 2 if num_tiles >= 2 else 1     # dual-TC on v7x, neutral elsewhere
    steps = int(pl.cdiv(num_tiles, num_partials))

    def row_block(p, s):
        # clamp tile index past the real tile count; those rows get masked out
        return (jnp.minimum(p * steps + s, num_tiles - 1), 0)

    in_specs = [pl.BlockSpec((tn, c), row_block),      # logits tile
                pl.BlockSpec((tn, 1), row_block)]      # targets tile
    if use_alpha:
        in_specs.append(pl.BlockSpec((tn, 1), row_block))  # alpha_t tile

    kernel = functools.partial(
        _focal_loss_kernel,
        gamma=float(gamma),
        n_total=int(n),
        use_alpha=use_alpha,
    )

    partials = pl.pallas_call(
        kernel,
        grid=(num_partials, steps),
        out_shape=jax.ShapeDtypeStruct((num_partials, 8, 128), jnp.float32),
        in_specs=in_specs,
        out_specs=pl.BlockSpec((1, 8, 128), lambda p, s: (p, 0, 0)),
        scratch_shapes=[pltpu.SMEM((1,), jnp.float32)],   # per-core running sum
        compiler_params=pltpu.CompilerParams(
            dimension_semantics=("parallel", "arbitrary"),
            vmem_limit_bytes=_vmem_limit_bytes(tn, c, itemsize, use_alpha, capacity),
        ),
    )(*args)

    return jnp.sum(partials[:, 0, 0]) * jnp.float32(scale)


def focal_loss_ref(logits, targets, alpha=None, gamma=2.0, reduction="mean"):
    """Pure-JAX reference mirroring the PyTorch module."""
    logits = logits.astype(jnp.float32)
    logp = jax.nn.log_softmax(logits, axis=-1)
    ce = -jnp.take_along_axis(logp, targets[:, None].astype(jnp.int32), axis=-1)[:, 0]
    pt = jnp.exp(-ce)
    focal = (1.0 - pt) ** gamma * ce
    if alpha is not None:
        focal = jnp.asarray(alpha, jnp.float32)[targets] * focal
    if reduction == "mean":
        return jnp.mean(focal)
    return jnp.sum(focal)


if __name__ == "__main__":
    key = jax.random.PRNGKey(0)
    k1, k2, k3, k4 = jax.random.split(key, 4)

    N, C = 32, 32  # small shapes: batch=32, num_classes=32
    logits = jax.random.normal(k1, (N, C), dtype=jnp.float32)
    targets = jax.random.randint(k2, (N,), 0, C, dtype=jnp.int32)
    alpha = jax.random.uniform(k3, (C,), dtype=jnp.float32, minval=0.25, maxval=1.0)

    def check(out, ref, name, rtol=1e-5, atol=1e-5):
        out = np.asarray(jax.block_until_ready(out))
        ref = np.asarray(ref)
        assert np.allclose(out, ref, rtol=rtol, atol=atol), (name, out, ref)

    # 1) with per-class alpha weights (mean)
    check(focal_loss_pallas(logits, targets, alpha=alpha, gamma=2.0),
          focal_loss_ref(logits, targets, alpha=alpha, gamma=2.0), "alpha/mean")

    # 2) without alpha (variant that skips the alpha stream entirely)
    check(focal_loss_pallas(logits, targets, gamma=2.0),
          focal_loss_ref(logits, targets, gamma=2.0), "noalpha/mean")

    # 3) multi-tile + dual-partial path with a clamped tail tile, sum reduction
    N2 = 80
    logits2 = jax.random.normal(k4, (N2, C), dtype=jnp.float32)
    targets2 = jax.random.randint(k2, (N2,), 0, C, dtype=jnp.int32)
    check(focal_loss_pallas(logits2, targets2, alpha=alpha, gamma=2.0,
                            reduction="sum", tile_rows=16),
          focal_loss_ref(logits2, targets2, alpha=alpha, gamma=2.0, reduction="sum"),
          "alpha/sum/tiled", rtol=1e-5, atol=1e-4)

    # 4) bf16 logits at the call boundary (kernel upcasts to f32)
    check(focal_loss_pallas(logits.astype(jnp.bfloat16), targets, gamma=2.0),
          focal_loss_ref(logits.astype(jnp.bfloat16), targets, gamma=2.0),
          "bf16/mean")

    print("KERNEL_OK")
</pallas_src>

<mosaic_0001>
module attributes {stable_mosaic.version = 11 : i64} {
  func.func @_focal_loss_kernel(%arg0: i32, %arg1: i32, %arg2: memref<32x32xf32, #tpu.memory_space<vmem>>, %arg3: memref<32x1xi32, #tpu.memory_space<vmem>>, %arg4: memref<32x1xf32, #tpu.memory_space<vmem>>, %arg5: memref<1x8x128xf32, #tpu.memory_space<vmem>>, %arg6: memref<1xf32, #tpu.memory_space<smem>>) attributes {dimension_semantics = [#tpu.dimension_semantics<parallel>, #tpu.dimension_semantics<arbitrary>], iteration_bounds = array<i64: 1, 1>, scalar_prefetch = 0 : i64, scratch_operands = 1 : i64, tpu.core_type = #tpu.core_type<tc>, window_params = [{transform_indices = @transform_0, window_bounds = array<i64: 32, 32>}, {transform_indices = @transform_1, window_bounds = array<i64: 32, 1>}, {transform_indices = @transform_2, window_bounds = array<i64: 32, 1>}, {transform_indices = @transform_3, window_bounds = array<i64: 1, 8, 128>}]} {
    %c0_i32 = arith.constant 0 : i32
    %0 = arith.cmpi eq, %arg1, %c0_i32 : i32
    %1 = arith.extui %0 : i1 to i32
    %c0_i32_0 = arith.constant 0 : i32
    %2 = arith.cmpi ne, %1, %c0_i32_0 : i32
    scf.if %2 {
      %cst_21 = arith.constant 0.000000e+00 : f32
      %c0_22 = arith.constant 0 : index
      %53 = memref.load %arg6[%c0_22] : memref<1xf32, #tpu.memory_space<smem>>
      memref.store %cst_21, %arg6[%c0_22] : memref<1xf32, #tpu.memory_space<smem>>
    } else {
    }
    %c0 = arith.constant 0 : index
    %c0_1 = arith.constant 0 : index
    %3 = vector.load %arg2[%c0, %c0_1] : memref<32x32xf32, #tpu.memory_space<vmem>>, vector<32x32xf32>
    %c0_2 = arith.constant 0 : index
    %c0_3 = arith.constant 0 : index
    %4 = vector.load %arg3[%c0_2, %c0_3] : memref<32x1xi32, #tpu.memory_space<vmem>>, vector<32x1xi32>
    %5 = tpu.iota {dimensions = array<i32: 1>} : vector<32x32xi32>
    %6 = vector.broadcast %4 : vector<32x1xi32> to vector<32x32xi32>
    %7 = arith.cmpi eq, %5, %6 : vector<32x32xi32>
    %cst = arith.constant dense<0xFF800000> : vector<32xf32>
    %8 = vector.multi_reduction <maximumf>, %3, %cst [1] : vector<32x32xf32> to vector<32xf32>
    %9 = vector.shape_cast %8 : vector<32xf32> to vector<32x1xf32>
    %10 = vector.broadcast %9 : vector<32x1xf32> to vector<32x32xf32>
    %11 = arith.subf %3, %10 : vector<32x32xf32>
    %12 = math.exp %11 : vector<32x32xf32>
    %cst_4 = arith.constant dense<0.000000e+00> : vector<32xf32>
    %13 = vector.multi_reduction <add>, %12, %cst_4 [1] : vector<32x32xf32> to vector<32xf32>
    %14 = vector.shape_cast %13 : vector<32xf32> to vector<32x1xf32>
    %cst_5 = arith.constant 0.000000e+00 : f32
    %15 = vector.broadcast %cst_5 : f32 to vector<32x32xf32>
    %16 = arith.select %7, %12, %15 : vector<32x32xi1>, vector<32x32xf32>
    %cst_6 = arith.constant dense<0.000000e+00> : vector<32xf32>
    %17 = vector.multi_reduction <add>, %16, %cst_6 [1] : vector<32x32xf32> to vector<32xf32>
    %18 = vector.shape_cast %17 : vector<32xf32> to vector<32x1xf32>
    %cst_7 = arith.constant 0.000000e+00 : f32
    %19 = vector.broadcast %cst_7 : f32 to vector<32x32xf32>
    %20 = arith.select %7, %3, %19 : vector<32x32xi1>, vector<32x32xf32>
    %cst_8 = arith.constant dense<0.000000e+00> : vector<32xf32>
    %21 = vector.multi_reduction <add>, %20, %cst_8 [1] : vector<32x32xf32> to vector<32xf32>
    %22 = vector.shape_cast %21 : vector<32xf32> to vector<32x1xf32>
    %23 = math.log %14 : vector<32x1xf32>
    %24 = arith.addf %23, %9 : vector<32x1xf32>
    %25 = arith.subf %24, %22 : vector<32x1xf32>
    %26 = arith.divf %18, %14 : vector<32x1xf32>
    %cst_9 = arith.constant 1.000000e+00 : f32
    %27 = vector.broadcast %cst_9 : f32 to vector<32x1xf32>
    %28 = arith.subf %27, %26 : vector<32x1xf32>
    %29 = arith.mulf %28, %28 : vector<32x1xf32>
    %30 = arith.mulf %29, %25 : vector<32x1xf32>
    %c0_10 = arith.constant 0 : index
    %c0_11 = arith.constant 0 : index
    %31 = vector.load %arg4[%c0_10, %c0_11] : memref<32x1xf32, #tpu.memory_space<vmem>>, vector<32x1xf32>
    %32 = arith.mulf %31, %30 : vector<32x1xf32>
    %c1_i32 = arith.constant 1 : i32
    %33 = arith.muli %arg0, %c1_i32 : i32
    %34 = arith.addi %33, %arg1 : i32
    %c32_i32 = arith.constant 32 : i32
    %35 = arith.muli %34, %c32_i32 : i32
    %36 = tpu.iota {dimensions = array<i32: 0>} : vector<32x1xi32>
    %37 = vector.broadcast %35 : i32 to vector<32x1xi32>
    %38 = arith.addi %37, %36 : vector<32x1xi32>
    %c32_i32_12 = arith.constant 32 : i32
    %39 = vector.broadcast %c32_i32_12 : i32 to vector<32x1xi32>
    %40 = arith.cmpi slt, %38, %39 : vector<32x1xi32>
    %c0_13 = arith.constant 0 : index
    %41 = memref.load %arg6[%c0_13] : memref<1xf32, #tpu.memory_space<smem>>
    %cst_14 = arith.constant 0.000000e+00 : f32
    %42 = vector.broadcast %cst_14 : f32 to vector<32x1xf32>
    %43 = arith.select %40, %32, %42 : vector<32x1xi1>, vector<32x1xf32>
    %44 = vector.shape_cast %43 : vector<32x1xf32> to vector<1x32x1xf32>
    %cst_15 = arith.constant dense<0.000000e+00> : vector<1xf32>
    %45 = vector.multi_reduction <add>, %44, %cst_15 [1, 2] : vector<1x32x1xf32> to vector<1xf32>
    %46 = vector.shape_cast %45 : vector<1xf32> to vector<1x1x1xf32>
    %47 = vector.extract %46[0, 0, 0] : f32 from vector<1x1x1xf32>
    %48 = arith.addf %41, %47 : f32
    %c0_16 = arith.constant 0 : index
    %49 = memref.load %arg6[%c0_16] : memref<1xf32, #tpu.memory_space<smem>>
    memref.store %48, %arg6[%c0_16] : memref<1xf32, #tpu.memory_space<smem>>
    %c0_17 = arith.constant 0 : index
    %50 = memref.load %arg6[%c0_17] : memref<1xf32, #tpu.memory_space<smem>>
    %51 = vector.broadcast %50 : f32 to vector<1x8x128xf32>
    %c0_18 = arith.constant 0 : index
    %c0_19 = arith.constant 0 : index
    %c0_20 = arith.constant 0 : index
    %52 = vector.load %arg5[%c0_18, %c0_19, %c0_20] : memref<1x8x128xf32, #tpu.memory_space<vmem>>, vector<1x8x128xf32>
    tpu.vector_store %arg5[%c0_18, %c0_19, %c0_20], %51 {strides = array<i32>} : memref<1x8x128xf32, #tpu.memory_space<vmem>>, vector<1x8x128xf32>,
    return
  }
  func.func @transform_0(%arg0: i32, %arg1: i32) -> (i32, i32) {
    %c1_i32 = arith.constant 1 : i32
    %0 = arith.muli %arg0, %c1_i32 : i32
    %1 = arith.addi %0, %arg1 : i32
    %c0_i32 = arith.constant 0 : i32
    %2 = arith.minsi %1, %c0_i32 : i32
    %c0_i32_0 = arith.constant 0 : i32
    %c0_i32_1 = arith.constant 0 : i32
    return %2, %c0_i32_0 : i32, i32
  }
  func.func @transform_1(%arg0: i32, %arg1: i32) -> (i32, i32) {
    %c1_i32 = arith.constant 1 : i32
    %0 = arith.muli %arg0, %c1_i32 : i32
    %1 = arith.addi %0, %arg1 : i32
    %c0_i32 = arith.constant 0 : i32
    %2 = arith.minsi %1, %c0_i32 : i32
    %c0_i32_0 = arith.constant 0 : i32
    %c0_i32_1 = arith.constant 0 : i32
    return %2, %c0_i32_0 : i32, i32
  }
  func.func @transform_2(%arg0: i32, %arg1: i32) -> (i32, i32) {
    %c1_i32 = arith.constant 1 : i32
    %0 = arith.muli %arg0, %c1_i32 : i32
    %1 = arith.addi %0, %arg1 : i32
    %c0_i32 = arith.constant 0 : i32
    %2 = arith.minsi %1, %c0_i32 : i32
    %c0_i32_0 = arith.constant 0 : i32
    %c0_i32_1 = arith.constant 0 : i32
    return %2, %c0_i32_0 : i32, i32
  }
  func.func @transform_3(%arg0: i32, %arg1: i32) -> (i32, i32, i32) {
    %c0_i32 = arith.constant 0 : i32
    %c0_i32_0 = arith.constant 0 : i32
    %c0_i32_1 = arith.constant 0 : i32
    return %arg0, %c0_i32, %c0_i32_0 : i32, i32, i32
  }
}

</mosaic_0001>

<llo_original>
// kernel: tpu_custom_call.1
$region0: #{tpu_custom_call.1}
  #allocation0 [shape = 'u32[]', space=smem, size = 0x4, offset = 0x4, fixed_abs, tag = 'smem constant byte address 0x4 - core index']
  #allocation1 [shape = 'u32[144,128]{1,0:T(1,128)}', space=vmem, size = 0x12000, scoped, tag = 'internal scratch']
  #allocation2 [shape = 'f32[1]{0:T(128)}', space=smem, size = 0x200, scoped, tag = 'scratch operand']
  %s0 = inlined_call_operand.vmem [shape: f32[32,32], index: 0, kind: input, shape index: {}]
  %s1 = inlined_call_operand.vmem [shape: s32[32,1], index: 1, kind: input, shape index: {}]
  %s2 = inlined_call_operand.vmem [shape: f32[32,1], index: 2, kind: input, shape index: {}]
  %s3 = inlined_call_operand.hbm [shape: f32[1,8,128], index: 3, kind: output, shape index: {}]
  %s4 = sld [smem:[#allocation0]]
  $region26: #{tpu_custom_call.1} parent=0
    _
  %s6 = ssub.s32 1, %s4
  %s7 = scalar_select 0, %s6, %s4
  $region1: #{tpu_custom_call.1} parent=0
    #allocation3 [shape = 'u8[4096]{0}', space=vmem, size = 0x1000, scoped, tag = 'output window, operand 0, single buffered']
    #allocation4 [shape = 's32[1]{0}', space=sflag, size = 0x4, scoped, tag = 'scoped memory for tpu_custom_call.1']
    %8 = vsyncpa [#allocation4], 0
    // Predicated region
    $region2: #{tpu_custom_call.1} parent=1 // pred_check
      _
    $region3: #{tpu_custom_call.1} parent=1 // pred_check_branch
      %10 = sbr.rel (0) target = $region5
    $region4: #{tpu_custom_call.1} parent=1 // pred_region
      %s11 = sadd.s32 0, 0
      %p12 = scmp.lt.s32.totalorder %s11, 0
      %s13 = scalar_select %p12, %s11, 0
      %s14 = smul.u32 4, %s13
      %p15 = scmp.lt.s32.totalorder %s14, 3
      %s16 = scalar_select %p15, %s14, 3
      %s17 = smul.addr %s16, 8
      %s18 = scalar_lea.vmem %s0, %s17
      %s19 = sadd.s32 0, 0
      %p20 = scmp.lt.s32.totalorder %s19, 0
      %s21 = scalar_select %p20, %s19, 0
      %s22 = smul.u32 4, %s21
    $region5: #{tpu_custom_call.1} parent=1 // pred_fallthru
      _
    // Predicated region
    $region6: #{tpu_custom_call.1} parent=1 // pred_check
      _
    $region7: #{tpu_custom_call.1} parent=1 // pred_check_branch
      %24 = sbr.rel (0) target = $region9
    $region8: #{tpu_custom_call.1} parent=1 // pred_region
      %s25 = sadd.s32 0, 0
      %p26 = scmp.lt.s32.totalorder %s25, 0
      %s27 = scalar_select %p26, %s25, 0
      %s28 = smul.u32 4, %s27
      %p29 = scmp.lt.s32.totalorder %s28, 3
      %s30 = scalar_select %p29, %s28, 3
      %s31 = smul.addr %s30, 8
      %s32 = scalar_lea.vmem %s1, %s31
      %s33 = sadd.s32 0, 0
      %p34 = scmp.lt.s32.totalorder %s33, 0
      %s35 = scalar_select %p34, %s33, 0
      %s36 = smul.u32 4, %s35
    $region9: #{tpu_custom_call.1} parent=1 // pred_fallthru
      _
    // Predicated region
    $region10: #{tpu_custom_call.1} parent=1 // pred_check
      _
    $region11: #{tpu_custom_call.1} parent=1 // pred_check_branch
      %38 = sbr.rel (0) target = $region13
    $region12: #{tpu_custom_call.1} parent=1 // pred_region
      %s39 = sadd.s32 0, 0
      %p40 = scmp.lt.s32.totalorder %s39, 0
      %s41 = scalar_select %p40, %s39, 0
      %s42 = smul.u32 4, %s41
      %p43 = scmp.lt.s32.totalorder %s42, 3
      %s44 = scalar_select %p43, %s42, 3
      %s45 = smul.addr %s44, 8
      %s46 = scalar_lea.vmem %s2, %s45
      %s47 = sadd.s32 0, 0
      %p48 = scmp.lt.s32.totalorder %s47, 0
      %s49 = scalar_select %p48, %s47, 0
      %s50 = smul.u32 4, %s49
    $region13: #{tpu_custom_call.1} parent=1 // pred_fallthru
      _
    %s51 = sadd.s32 0, 0
    %p52 = scmp.lt.s32.totalorder %s51, 0
    %s53 = scalar_select %p52, %s51, 0
    %s54 = smul.u32 4, %s53
    %p55 = scmp.lt.s32.totalorder %s54, 3
    %s56 = scalar_select %p55, %s54, 3
    %s57 = smul.addr %s56, 8
    %s58 = scalar_lea.vmem %s0, %s57
    %s59 = sadd.s32 0, 0
    %p60 = scmp.lt.s32.totalorder %s59, 0
    %s61 = scalar_select %p60, %s59, 0
    %s62 = smul.u32 4, %s61
    %p63 = scmp.lt.s32.totalorder %s62, 3
    %s64 = scalar_select %p63, %s62, 3
    %s65 = smul.addr %s64, 8
    %s66 = scalar_lea.vmem %s1, %s65
    %s67 = sadd.s32 0, 0
    %p68 = scmp.lt.s32.totalorder %s67, 0
    %s69 = scalar_select %p68, %s67, 0
    %s70 = smul.u32 4, %s69
    %p71 = scmp.lt.s32.totalorder %s70, 3
    %s72 = scalar_select %p71, %s70, 3
    %s73 = smul.addr %s72, 8
    %s74 = scalar_lea.vmem %s2, %s73
    %s75 = sadd.s32 0, 0
    %p76 = scmp.lt.s32.totalorder %s75, 0
    %s77 = scalar_select %p76, %s75, 0
    %s78 = smul.u32 4, %s77
    %p79 = scmp.lt.s32.totalorder %s78, 3
    %s80 = scalar_select %p79, %s78, 3
    %s81 = smul.addr %s80, 8
    %s82 = scalar_lea.vmem %s0, %s81
    %s83 = sadd.s32 0, 0
    %p84 = scmp.lt.s32.totalorder %s83, 0
    %s85 = scalar_select %p84, %s83, 0
    %s86 = smul.u32 4, %s85
    %s87 = sadd.s32 0, 0
    %p88 = scmp.lt.s32.totalorder %s87, 0
    %s89 = scalar_select %p88, %s87, 0
    %s90 = smul.u32 4, %s89
    %p91 = scmp.lt.s32.totalorder %s90, 3
    %s92 = scalar_select %p91, %s90, 3
    %s93 = smul.addr %s92, 8
    %s94 = scalar_lea.vmem %s1, %s93
    %s95 = sadd.s32 0, 0
    %p96 = scmp.lt.s32.totalorder %s95, 0
    %s97 = scalar_select %p96, %s95, 0
    %s98 = smul.u32 4, %s97
    %s99 = sadd.s32 0, 0
    %p100 = scmp.lt.s32.totalorder %s99, 0
    %s101 = scalar_select %p100, %s99, 0
    %s102 = smul.u32 4, %s101
    %p103 = scmp.lt.s32.totalorder %s102, 3
    %s104 = scalar_select %p103, %s102, 3
    %s105 = smul.addr %s104, 8
    %s106 = scalar_lea.vmem %s2, %s105
    %s107 = sadd.s32 0, 0
    %p108 = scmp.lt.s32.totalorder %s107, 0
    %s109 = scalar_select %p108, %s107, 0
    %s110 = smul.u32 4, %s109
    %p111 = scmp.eq.s32.totalorder 0, 0
    // Predicated region
    $region14: #{tpu_custom_call.1} parent=1 // pred_check
      %p112 = pneg %p111
    $region15: #{tpu_custom_call.1} parent=1 // pred_check_branch
      %114 = sbr.rel (%p112) target = $region17
    $region16: #{tpu_custom_call.1} parent=1 // pred_region
      %s115 = scalar_lea.smem [#allocation2], 0
      %116 = sst [smem:[%s115]] 0.0
    $region17: #{tpu_custom_call.1} parent=1 // pred_fallthru
      _
    %v117 = vld [vmem:[%s82] sm:$0xff]
    %v118 = vld [vmem:[%s82 + $0x8] sm:$0xff]
    %v119 = vld [vmem:[%s82 + $0x10] sm:$0xff]
    %v120 = vld [vmem:[%s82 + $0x18] sm:$0xff]
    %v121 = vld [vmem:[%s94] sm:$0xff]
    %v122 = vld [vmem:[%s94 + $0x8] sm:$0xff]
    %v123 = vld [vmem:[%s94 + $0x10] sm:$0xff]
    %v124 = vld [vmem:[%s94 + $0x18] sm:$0xff]
    %v125 = vlaneseq
    %v126 = vand.u32 %v125, 127
    %127 = vset.pattern.permute.xlu0 0
    %128 = vperm.xlu0 %127, %v121
    %v129 = vpop.permute.xlu0 %128
    %130 = vset.pattern.permute.xlu0 0
    %131 = vperm.xlu0 %130, %v122
    %v132 = vpop.permute.xlu0 %131
    %133 = vset.pattern.permute.xlu0 0
    %134 = vperm.xlu0 %133, %v123
    %v135 = vpop.permute.xlu0 %134
    %136 = vset.pattern.permute.xlu0 0
    %137 = vperm.xlu0 %136, %v124
    %v138 = vpop.permute.xlu0 %137
    %vm139 = vcmp.eq.s32.totalorder %v126, %v129
    %vm140 = vcmp.eq.s32.totalorder %v126, %v132
    %vm141 = vcmp.eq.s32.totalorder %v126, %v135
    %vm142 = vcmp.eq.s32.totalorder %v126, %v138
    %vm143 = vcmask 261120
    %v144 = vsel %vm143, %v117, -inf
    %145 = vmax.xlane.f32.xlu0 %v144
    %v146 = vpop.xlane.xlu0 %145
    %v147 = vsel %vm143, %v118, -inf
    %148 = vmax.xlane.f32.xlu0 %v147
    %v149 = vpop.xlane.xlu0 %148
    %v150 = vsel %vm143, %v119, -inf
    %151 = vmax.xlane.f32.xlu0 %v150
    %v152 = vpop.xlane.xlu0 %151
    %v153 = vsel %vm143, %v120, -inf
    %154 = vmax.xlane.f32.xlu0 %v153
    %v155 = vpop.xlane.xlu0 %154
    %v156 = vsub.f32 %v117, %v146
    %v157 = vsub.f32 %v118, %v149
    %v158 = vsub.f32 %v119, %v152
    %v159 = vsub.f32 %v120, %v155
    %v160 = vmul.f32 %v156, 1.442695
    %v161 = vpow.pop %v160
    %v162 = vmul.f32 %v157, 1.442695
    %v163 = vpow.pop %v162
    %v164 = vmul.f32 %v158, 1.442695
    %v165 = vpow.pop %v164
    %v166 = vmul.f32 %v159, 1.442695
    %v167 = vpow.pop %v166
    %v168 = vsel %vm143, %v161, 0.0
    %169 = vadd.xlane.f32.xlu0 %v168
    %v170 = vpop.xlane.xlu0 %169
    %v171 = vsel %vm143, %v163, 0.0
    %172 = vadd.xlane.f32.xlu0 %v171
    %v173 = vpop.xlane.xlu0 %172
    %v174 = vsel %vm143, %v165, 0.0
    %175 = vadd.xlane.f32.xlu0 %v174
    %v176 = vpop.xlane.xlu0 %175
    %v177 = vsel %vm143, %v167, 0.0
    %178 = vadd.xlane.f32.xlu0 %v177
    %v179 = vpop.xlane.xlu0 %178
    %v180 = vsel %vm139, %v161, 0.0
    %v181 = vsel %vm140, %v163, 0.0
    %v182 = vsel %vm141, %v165, 0.0
    %v183 = vsel %vm142, %v167, 0.0
    %v184 = vsel %vm143, %v180, 0.0
    %185 = vadd.xlane.f32.xlu0 %v184
    %v186 = vpop.xlane.xlu0 %185
    %v187 = vsel %vm143, %v181, 0.0
    %188 = vadd.xlane.f32.xlu0 %v187
    %v189 = vpop.xlane.xlu0 %188
    %v190 = vsel %vm143, %v182, 0.0
    %191 = vadd.xlane.f32.xlu0 %v190
    %v192 = vpop.xlane.xlu0 %191
    %v193 = vsel %vm143, %v183, 0.0
    %194 = vadd.xlane.f32.xlu0 %v193
    %v195 = vpop.xlane.xlu0 %194
    %v196 = vsel %vm139, %v117, 0.0
    %v197 = vsel %vm140, %v118, 0.0
    %v198 = vsel %vm141, %v119, 0.0
    %v199 = vsel %vm142, %v120, 0.0
    %v200 = vsel %vm143, %v196, 0.0
    %201 = vadd.xlane.f32.xlu0 %v200
    %v202 = vpop.xlane.xlu0 %201
    %v203 = vsel %vm143, %v197, 0.0
    %204 = vadd.xlane.f32.xlu0 %v203
    %v205 = vpop.xlane.xlu0 %204
    %v206 = vsel %vm143, %v198, 0.0
    %207 = vadd.xlane.f32.xlu0 %v206
    %v208 = vpop.xlane.xlu0 %207
    %v209 = vsel %vm143, %v199, 0.0
    %210 = vadd.xlane.f32.xlu0 %v209
    %v211 = vpop.xlane.xlu0 %210
    %v212 = vlog2.pop %v170
    %v213 = vmul.f32 %v212, 0.6931472
    %v214 = vlog2.pop %v173
    %v215 = vmul.f32 %v214, 0.6931472
    %v216 = vlog2.pop %v176
    %v217 = vmul.f32 %v216, 0.6931472
    %v218 = vlog2.pop %v179
    %v219 = vmul.f32 %v218, 0.6931472
    %v220 = vadd.f32 %v213, %v146
    %v221 = vadd.f32 %v215, %v149
    %v222 = vadd.f32 %v217, %v152
    %v223 = vadd.f32 %v219, %v155
    %v224 = vsub.f32 %v220, %v202
    %v225 = vsub.f32 %v221, %v205
    %v226 = vsub.f32 %v222, %v208
    %v227 = vsub.f32 %v223, %v211
    %v228 = vrcp.pop %v170
    %v229 = vmul.f32 %v186, %v228
    %v230 = vrcp.pop %v173
    %v231 = vmul.f32 %v189, %v230
    %v232 = vrcp.pop %v176
    %v233 = vmul.f32 %v192, %v232
    %v234 = vrcp.pop %v179
    %v235 = vmul.f32 %v195, %v234
    %v236 = vsub.f32 1.0, %v229
    %v237 = vsub.f32 1.0, %v231
    %v238 = vsub.f32 1.0, %v233
    %v239 = vsub.f32 1.0, %v235
    %v240 = vmul.f32 %v236, %v236
    %v241 = vmul.f32 %v237, %v237
    %v242 = vmul.f32 %v238, %v238
    %v243 = vmul.f32 %v239, %v239
    %v244 = vmul.f32 %v240, %v224
    %v245 = vmul.f32 %v241, %v225
    %v246 = vmul.f32 %v242, %v226
    %v247 = vmul.f32 %v243, %v227
    %v248 = vld [vmem:[%s106] sm:$0xff]
    %v249 = vld [vmem:[%s106 + $0x8] sm:$0xff]
    %v250 = vld [vmem:[%s106 + $0x10] sm:$0xff]
    %v251 = vld [vmem:[%s106 + $0x18] sm:$0xff]
    %v252 = vmul.f32 %v248, %v244
    %v253 = vmul.f32 %v249, %v245
    %v254 = vmul.f32 %v250, %v246
    %v255 = vmul.f32 %v251, %v247
    %s256 = sadd.s32 0, 0
    %s257 = smul.u32 %s256, 32
    %v258 = vlaneseq
    %v259 = vshrl.u32 %v258, 7
    %v260 = vadd.s32 %v259, 8
    %v261 = vadd.s32 %v259, 16
    %v262 = vadd.s32 %v259, 24
    %v263 = vstv %s257
    %v264 = vadd.s32 %v263, %v259
    %v265 = vadd.s32 %v263, %v260
    %v266 = vadd.s32 %v263, %v261
    %v267 = vadd.s32 %v263, %v262
    %vm268 = vcmp.lt.s32.totalorder %v264, 32
    %vm269 = vcmp.lt.s32.totalorder %v265, 32
    %vm270 = vcmp.lt.s32.totalorder %v266, 32
    %vm271 = vcmp.lt.s32.totalorder %v267, 32
    %s272 = sld [smem:[#allocation2]]
    %v273 = vsel %vm268, %v252, 0.0
    %v274 = vsel %vm269, %v253, 0.0
    %v275 = vsel %vm270, %v254, 0.0
    %v276 = vsel %vm271, %v255, 0.0
    %vm277 = vcmask 7168
    %v278 = vsel %vm277, %v273, 0.0
    %v279 = vsel %vm277, %v274, 0.0
    %v280 = vadd.f32 %v278, %v279
    %v281 = vsel %vm277, %v275, 0.0
    %v282 = vadd.f32 %v280, %v281
    %v283 = vsel %vm277, %v276, 0.0
    %v284 = vadd.f32 %v282, %v283
    %285 = vadd.xlane.f32.xlu0 %v284
    %v286 = vpop.xlane.xlu0 %285
    %v287 = vrot.slane %v286, 4
    %v288 = vadd.f32 %v286, %v287
    %v289 = vrot.slane %v288, 2
    %v290 = vadd.f32 %v288, %v289
    %v291 = vrot.slane %v290, 1
    %v292 = vadd.f32 %v290, %v291
    %s293 = vtos %v292
    %s294 = sadd.f32 %s272, %s293
    %s295 = scalar_lea.smem [#allocation2], 0
    %296 = sst [smem:[%s295]] %s294
    %s297 = sld [smem:[#allocation2]]
    %v298 = vstv %s297
    %299 = vst [vmem:[#allocation3] sm:$0xff] %v298
    // Predicated region
    $region18: #{tpu_custom_call.1} parent=1 // pred_check
      _
    $region19: #{tpu_custom_call.1} parent=1 // pred_check_branch
      %301 = sbr.rel (0) target = $region21
    $region20: #{tpu_custom_call.1} parent=1 // pred_region
      %s303 = ssub.s32 128, 128
      %304 = vsyncadd [#allocation4], %s303
      %s306 = sshll.u32 [#allocation3], 4
      %s307 = int_to_ptr.vmem [resolvable:$true] %s306
      %309 = dma.vmem_to_hbm [thread:$0]  %s307, 128, %s3, [#allocation4]
    $region21: #{tpu_custom_call.1} parent=1 // pred_fallthru
      _
    // Predicated region
    $region22: #{tpu_custom_call.1} parent=1 // pred_check
      _
    $region23: #{tpu_custom_call.1} parent=1 // pred_check_branch
      %311 = sbr.rel (0) target = $region25
    $region24: #{tpu_custom_call.1} parent=1 // pred_region
      %312 = dma.done [#allocation4], 128
    $region25: #{tpu_custom_call.1} parent=1 // pred_fallthru
      _
    %313 = vsyncpa [#allocation4], 1

</llo_original>
